<compile_context>
chip_gen: v7x
topology: tpu7x:2x2x1
jax: 0.10.0
libtpu: 0.0.40
codegen_flags: <defaults>
</compile_context>

<pallas_src>
import math

import jax
import jax.numpy as jnp
from jax.experimental import pallas as pl
from jax.experimental.pallas import tpu as pltpu


Z_DIM = 99            # Discriminator input width (z_dim)
HL_DIM = (100, 100)   # hidden widths of the two hl_loop blocks
BN_EPS = 1e-5         # torch.nn.BatchNorm1d default eps

H_PAD = 128           # 100 -> 128 lanes (hidden dims padded to a lane multiple)


def _round_up(n, m):
    return ((n + m - 1) // m) * m


# ----------------------------------------------------------------------------- kernel
def _discriminator_kernel(
    x_ref,      # (TB, 99)  f32  — batch tile of the raw input
    wx_ref,     # (99, 256) bf16 — [w1 | w2b] fused x-path weight (zero-padded columns)
    w2a_ref,    # (128,128) bf16 — BN1-folded h1-path weight of layer 2 (zero padded)
    vec_ref,    # (8, 128)  f32  — packed small vectors (see prepare_params)
    o_ref,      # (TB, 1)   f32
):
    x_f32 = x_ref[...]                                 # (TB, 99) f32
    x_bf = x_f32.astype(jnp.bfloat16)

    b1 = vec_ref[0:1, :]                               # (1,128)
    b2 = vec_ref[1:2, :]                               # (1,128) BN1-folded layer-2 bias
    w3a = vec_ref[2:3, :]                              # (1,128) BN2-folded final row (h2)
    w3b = vec_ref[3:4, :]                              # (1,128) BN1-folded final row (h1)
    w3c = vec_ref[4:5, :Z_DIM]                         # (1, 99) final row (x)
    b3 = vec_ref[5:6, 0:1]                             # (1, 1)  BN-folded final bias

    # ---- fused x-path matmul: x @ [w1 | w2b] -> (TB, 256), sliced at lane 128 ----
    zx = jnp.dot(x_bf, wx_ref[...], preferred_element_type=jnp.float32)
    z1 = zx[:, :H_PAD] + b1                            # Linear(99,100) pre-activation
    h1 = jnp.where(z1 > 0, z1, 0.2 * z1)               # LeakyReLU(0.2); BN folded downstream

    # ---- layer 2 on cat([bn(h1), x]) with BN folded into w2a'/b2' ----
    z2 = (jnp.dot(h1.astype(jnp.bfloat16), w2a_ref[...],
                  preferred_element_type=jnp.float32)
          + zx[:, H_PAD:] + b2)
    h2 = jnp.where(z2 > 0, z2, 0.2 * z2)

    # ---- final Linear(299,1) on cat([bn(h2), bn(h1), x]) as two lane reductions ----
    acc = h2 * w3a + h1 * w3b                          # VPU adds; single 128-lane reduce
    z3 = (jnp.sum(acc, axis=1, keepdims=True)
          + jnp.sum(x_f32 * w3c, axis=1, keepdims=True)
          + b3)

    # Exact sigmoid (per review: approx reciprocal on a (TB,1) tensor buys nothing).
    o_ref[...] = (1.0 / (1.0 + jnp.exp(-z3))).astype(o_ref.dtype)


# --------------------------------------------------------------------------- prep
def _fold_bn(gamma, beta, mean, var, eps=BN_EPS):
    # Inference-mode BatchNorm1d as a per-feature affine: y = h*scale + shift.
    scale = gamma * jax.lax.rsqrt(var + eps)
    shift = beta - mean * scale
    return scale, shift


def prepare_params(params):
    """One-time layout prep: BN folding, concat-weight splitting, padding, bf16 casts.

    `params` holds unpadded float32 arrays with linear weights stored as
    (in_features, out_features) (i.e. transposed vs torch).
    """
    H1, H2 = HL_DIM

    s1, t1 = _fold_bn(params["bn1_gamma"], params["bn1_beta"],
                      params["bn1_mean"], params["bn1_var"])
    s2, t2 = _fold_bn(params["bn2_gamma"], params["bn2_beta"],
                      params["bn2_mean"], params["bn2_var"])

    w1 = params["w1"]                 # (99, 100)
    w2 = params["w2"]                 # (199, 100): rows 0:100 act on bn(h1), 100:199 on x
    w2a, w2b = w2[:H1], w2[H1:]
    w3 = params["w3"][:, 0]           # (299,): [h2 | h1 | x] rows
    w3a, w3b, w3c = w3[:H2], w3[H2:H2 + H1], w3[H2 + H1:]
    b3 = params["b3"][0]

    # Exact algebraic BN fold (padding applied AFTER folding so padded lanes stay 0).
    w2a_f = s1[:, None] * w2a                       # (100, 100)
    b2_f = params["b2"] + t1 @ w2a                  # (100,)
    w3a_f = s2 * w3a                                # (100,)
    w3b_f = s1 * w3b                                # (100,)
    b3_f = b3 + jnp.sum(t2 * w3a) + jnp.sum(t1 * w3b)

    # Fused x-path weight: x @ [w1 | w2b]  (output lanes 0:128 -> z1, 128:256 -> z2 x-part).
    wx = jnp.zeros((Z_DIM, 2 * H_PAD), jnp.float32)
    wx = wx.at[:, :H1].set(w1)
    wx = wx.at[:, H_PAD:H_PAD + H2].set(w2b)

    w2a_p = jnp.zeros((H_PAD, H_PAD), jnp.float32)
    w2a_p = w2a_p.at[:H1, :H2].set(w2a_f)

    # Packed small vectors: one (8,128) f32 resident operand.
    vecs = jnp.zeros((8, H_PAD), jnp.float32)
    vecs = vecs.at[0, :H1].set(params["b1"])
    vecs = vecs.at[1, :H2].set(b2_f)
    vecs = vecs.at[2, :H2].set(w3a_f)
    vecs = vecs.at[3, :H1].set(w3b_f)
    vecs = vecs.at[4, :Z_DIM].set(w3c)
    vecs = vecs.at[5, 0].set(b3_f)

    return {
        "wx": wx.astype(jnp.bfloat16),
        "w2a": w2a_p.astype(jnp.bfloat16),
        "vecs": vecs,
    }


# --------------------------------------------------------------------------- wrapper
def discriminator_forward(x, prepared, *, block_b=2048):
    """Fused Pallas forward of `Discriminator` (inference mode).

    x: (B, 99) float32.  `prepared` = prepare_params(params).  Returns (B, 1) f32.
    """
    B, D = x.shape
    assert D == Z_DIM, (B, D)

    # Large adaptive batch tile to amortize the ~0.35 us/step grid overhead …
    TB = min(block_b, _round_up(B, 16))
    # … but keep >= 2 tiles so v7x's two TensorCores both get work (and the x DMA
    # still double-buffers).  No-op for tiny batches.
    if _round_up(B, TB) // TB < 2 and TB >= 32:
        TB = _round_up(TB // 2, 16)
    B_pad = _round_up(B, TB)
    x_in = x if B_pad == B else jnp.pad(x, ((0, B_pad - B), (0, 0)))

    nb = B_pad // TB

    out = pl.pallas_call(
        _discriminator_kernel,
        out_shape=jax.ShapeDtypeStruct((B_pad, 1), jnp.float32),
        grid=(nb,),
        in_specs=[
            pl.BlockSpec((TB, Z_DIM), lambda i: (i, 0)),          # batch-tiled x (raw f32)
            pl.BlockSpec((Z_DIM, 2 * H_PAD), lambda i: (0, 0)),   # VMEM-resident weights
            pl.BlockSpec((H_PAD, H_PAD), lambda i: (0, 0)),
            pl.BlockSpec((8, H_PAD), lambda i: (0, 0)),
        ],
        out_specs=pl.BlockSpec((TB, 1), lambda i: (i, 0)),
        compiler_params=pltpu.CompilerParams(
            dimension_semantics=("parallel",),   # v7x: batch tiles shard across both TCs
        ),
    )(x_in, prepared["wx"], prepared["w2a"], prepared["vecs"])

    return out[:B]


# ------------------------------------------------------------------------- reference
def reference_discriminator(x, p, eps=BN_EPS):
    """Pure-JAX f32 reference of the PyTorch Discriminator forward (eval mode)."""
    def bn(h, g, b, m, v):
        return (h - m) * (g / jnp.sqrt(v + eps)) + b

    def lrelu(z):
        return jnp.where(z > 0, z, 0.2 * z)

    h1 = bn(lrelu(x @ p["w1"] + p["b1"]),
            p["bn1_gamma"], p["bn1_beta"], p["bn1_mean"], p["bn1_var"])
    x1 = jnp.concatenate([h1, x], axis=1)            # torch.cat([l4, l0], dim=1)
    h2 = bn(lrelu(x1 @ p["w2"] + p["b2"]),
            p["bn2_gamma"], p["bn2_beta"], p["bn2_mean"], p["bn2_var"])
    x2 = jnp.concatenate([h2, x1], axis=1)
    return jax.nn.sigmoid(x2 @ p["w3"] + p["b3"])


def _linear_init(key, fan_in, shape):
    # torch.nn.Linear default: U(-1/sqrt(fan_in), 1/sqrt(fan_in)) for weight and bias.
    bound = 1.0 / math.sqrt(fan_in)
    return jax.random.uniform(key, shape, jnp.float32, -bound, bound)


def make_params(key):
    ks = jax.random.split(key, 16)
    H1, H2 = HL_DIM
    d1_in, d2_in, d3_in = Z_DIM, Z_DIM + H1, Z_DIM + H1 + H2      # 99, 199, 299
    # Non-trivial BN running stats / affine so the BN path is actually exercised.
    # TODO(synk): training-mode BatchNorm1d (batch statistics) would couple rows across
    # the parallel batch grid; this kernel implements inference mode (running stats).
    return {
        "w1": _linear_init(ks[0], d1_in, (d1_in, H1)),
        "b1": _linear_init(ks[1], d1_in, (H1,)),
        "bn1_gamma": 1.0 + 0.1 * jax.random.normal(ks[2], (H1,), jnp.float32),
        "bn1_beta": 0.1 * jax.random.normal(ks[3], (H1,), jnp.float32),
        "bn1_mean": 0.1 * jax.random.normal(ks[4], (H1,), jnp.float32),
        "bn1_var": jax.random.uniform(ks[5], (H1,), jnp.float32, 0.5, 1.5),
        "w2": _linear_init(ks[6], d2_in, (d2_in, H2)),
        "b2": _linear_init(ks[7], d2_in, (H2,)),
        "bn2_gamma": 1.0 + 0.1 * jax.random.normal(ks[8], (H2,), jnp.float32),
        "bn2_beta": 0.1 * jax.random.normal(ks[9], (H2,), jnp.float32),
        "bn2_mean": 0.1 * jax.random.normal(ks[10], (H2,), jnp.float32),
        "bn2_var": jax.random.uniform(ks[11], (H2,), jnp.float32, 0.5, 1.5),
        "w3": _linear_init(ks[12], d3_in, (d3_in, 1)),
        "b3": _linear_init(ks[13], d3_in, (1,)),
    }


if __name__ == "__main__":
    batch = 256   # small, but gives two batch tiles to exercise the parallel grid

    key = jax.random.PRNGKey(0)
    kx, kp = jax.random.split(key)
    x = jax.random.normal(kx, (batch, Z_DIM), jnp.float32)
    params = make_params(kp)

    prepared = prepare_params(params)            # one-time, hoisted out of the call path
    out = discriminator_forward(x, prepared)
    out = jax.block_until_ready(out)
    ref = reference_discriminator(x, params)

    assert out.shape == (batch, 1), out.shape
    assert bool(jnp.all(jnp.isfinite(out)))
    max_err = float(jnp.max(jnp.abs(out - ref)))
    # bf16 weight/activation storage in the matmuls gives ~1e-3-level differences vs
    # the pure-f32 reference; sigmoid outputs are in (0, 1).
    assert max_err < 1e-2, f"max |kernel - reference| = {max_err}"

    print("KERNEL_OK")
</pallas_src>

<mosaic_0001>
module attributes {stable_mosaic.version = 11 : i64} {
  func.func @_discriminator_kernel(%arg0: i32, %arg1: memref<128x99xf32, #tpu.memory_space<vmem>>, %arg2: memref<99x256xbf16, #tpu.memory_space<vmem>>, %arg3: memref<128x128xbf16, #tpu.memory_space<vmem>>, %arg4: memref<8x128xf32, #tpu.memory_space<vmem>>, %arg5: memref<128x1xf32, #tpu.memory_space<vmem>>) attributes {dimension_semantics = [#tpu.dimension_semantics<parallel>], iteration_bounds = array<i64: 2>, scalar_prefetch = 0 : i64, scratch_operands = 0 : i64, tpu.core_type = #tpu.core_type<tc>, window_params = [{transform_indices = @transform_0, window_bounds = array<i64: 128, 99>}, {pipeline_mode = #tpu.pipeline_mode<synchronous>, transform_indices = @transform_1, window_bounds = array<i64: 99, 256>}, {pipeline_mode = #tpu.pipeline_mode<synchronous>, transform_indices = @transform_2, window_bounds = array<i64: 128, 128>}, {pipeline_mode = #tpu.pipeline_mode<synchronous>, transform_indices = @transform_3, window_bounds = array<i64: 8, 128>}, {transform_indices = @transform_4, window_bounds = array<i64: 128, 1>}]} {
    %c0 = arith.constant 0 : index
    %c0_0 = arith.constant 0 : index
    %0 = vector.load %arg1[%c0, %c0_0] : memref<128x99xf32, #tpu.memory_space<vmem>>, vector<128x99xf32>
    %1 = arith.truncf %0 : vector<128x99xf32> to vector<128x99xbf16>
    %c0_1 = arith.constant 0 : index
    %c0_2 = arith.constant 0 : index
    %2 = vector.load %arg4[%c0_1, %c0_2] : memref<8x128xf32, #tpu.memory_space<vmem>>, vector<1x128xf32>
    %c1 = arith.constant 1 : index
    %c0_3 = arith.constant 0 : index
    %3 = vector.load %arg4[%c1, %c0_3] : memref<8x128xf32, #tpu.memory_space<vmem>>, vector<1x128xf32>
    %c2 = arith.constant 2 : index
    %c0_4 = arith.constant 0 : index
    %4 = vector.load %arg4[%c2, %c0_4] : memref<8x128xf32, #tpu.memory_space<vmem>>, vector<1x128xf32>
    %c3 = arith.constant 3 : index
    %c0_5 = arith.constant 0 : index
    %5 = vector.load %arg4[%c3, %c0_5] : memref<8x128xf32, #tpu.memory_space<vmem>>, vector<1x128xf32>
    %c4 = arith.constant 4 : index
    %c0_6 = arith.constant 0 : index
    %6 = vector.load %arg4[%c4, %c0_6] : memref<8x128xf32, #tpu.memory_space<vmem>>, vector<1x99xf32>
    %c5 = arith.constant 5 : index
    %c0_7 = arith.constant 0 : index
    %7 = vector.load %arg4[%c5, %c0_7] : memref<8x128xf32, #tpu.memory_space<vmem>>, vector<1x1xf32>
    %c0_8 = arith.constant 0 : index
    %c0_9 = arith.constant 0 : index
    %8 = vector.load %arg2[%c0_8, %c0_9] : memref<99x256xbf16, #tpu.memory_space<vmem>>, vector<99x256xbf16>
    %cst = arith.constant dense<0.000000e+00> : vector<128x256xf32>
    %9 = tpu.matmul %1, %8, %cst {dimension_numbers = #tpu.dot_dimension_numbers<[1], [0], [0], [1], [0, 0, 1, 1], [], []>} : vector<128x99xbf16>, vector<99x256xbf16>, vector<128x256xf32> -> vector<128x256xf32>
    %10 = vector.extract_strided_slice %9 {offsets = [0, 0], sizes = [128, 128], strides = [1, 1]} : vector<128x256xf32> to vector<128x128xf32>
    %11 = vector.broadcast %2 : vector<1x128xf32> to vector<128x128xf32>
    %12 = arith.addf %10, %11 : vector<128x128xf32>
    %cst_10 = arith.constant 0.000000e+00 : f32
    %13 = vector.broadcast %cst_10 : f32 to vector<128x128xf32>
    %14 = arith.cmpf ogt, %12, %13 : vector<128x128xf32>
    %cst_11 = arith.constant 2.000000e-01 : f32
    %15 = vector.broadcast %cst_11 : f32 to vector<128x128xf32>
    %16 = arith.mulf %15, %12 : vector<128x128xf32>
    %17 = arith.select %14, %12, %16 : vector<128x128xi1>, vector<128x128xf32>
    %18 = arith.truncf %17 : vector<128x128xf32> to vector<128x128xbf16>
    %c0_12 = arith.constant 0 : index
    %c0_13 = arith.constant 0 : index
    %19 = vector.load %arg3[%c0_12, %c0_13] : memref<128x128xbf16, #tpu.memory_space<vmem>>, vector<128x128xbf16>
    %cst_14 = arith.constant dense<0.000000e+00> : vector<128x128xf32>
    %20 = tpu.matmul %18, %19, %cst_14 {dimension_numbers = #tpu.dot_dimension_numbers<[1], [0], [0], [1], [0, 0, 1, 1], [], []>} : vector<128x128xbf16>, vector<128x128xbf16>, vector<128x128xf32> -> vector<128x128xf32>
    %21 = vector.extract_strided_slice %9 {offsets = [0, 128], sizes = [128, 128], strides = [1, 1]} : vector<128x256xf32> to vector<128x128xf32>
    %22 = arith.addf %20, %21 : vector<128x128xf32>
    %23 = vector.broadcast %3 : vector<1x128xf32> to vector<128x128xf32>
    %24 = arith.addf %22, %23 : vector<128x128xf32>
    %cst_15 = arith.constant 0.000000e+00 : f32
    %25 = vector.broadcast %cst_15 : f32 to vector<128x128xf32>
    %26 = arith.cmpf ogt, %24, %25 : vector<128x128xf32>
    %cst_16 = arith.constant 2.000000e-01 : f32
    %27 = vector.broadcast %cst_16 : f32 to vector<128x128xf32>
    %28 = arith.mulf %27, %24 : vector<128x128xf32>
    %29 = arith.select %26, %24, %28 : vector<128x128xi1>, vector<128x128xf32>
    %30 = vector.broadcast %4 : vector<1x128xf32> to vector<128x128xf32>
    %31 = arith.mulf %29, %30 : vector<128x128xf32>
    %32 = vector.broadcast %5 : vector<1x128xf32> to vector<128x128xf32>
    %33 = arith.mulf %17, %32 : vector<128x128xf32>
    %34 = arith.addf %31, %33 : vector<128x128xf32>
    %cst_17 = arith.constant dense<0.000000e+00> : vector<128xf32>
    %35 = vector.multi_reduction <add>, %34, %cst_17 [1] : vector<128x128xf32> to vector<128xf32>
    %36 = vector.shape_cast %35 : vector<128xf32> to vector<128x1xf32>
    %37 = vector.broadcast %6 : vector<1x99xf32> to vector<128x99xf32>
    %38 = arith.mulf %0, %37 : vector<128x99xf32>
    %cst_18 = arith.constant dense<0.000000e+00> : vector<128xf32>
    %39 = vector.multi_reduction <add>, %38, %cst_18 [1] : vector<128x99xf32> to vector<128xf32>
    %40 = vector.shape_cast %39 : vector<128xf32> to vector<128x1xf32>
    %41 = arith.addf %36, %40 : vector<128x1xf32>
    %42 = vector.broadcast %7 : vector<1x1xf32> to vector<128x1xf32>
    %43 = arith.addf %41, %42 : vector<128x1xf32>
    %cst_19 = arith.constant 0.000000e+00 : f32
    %44 = vector.broadcast %cst_19 : f32 to vector<128x1xf32>
    %45 = arith.subf %44, %43 : vector<128x1xf32>
    %46 = math.exp %45 : vector<128x1xf32>
    %cst_20 = arith.constant 1.000000e+00 : f32
    %47 = vector.broadcast %cst_20 : f32 to vector<128x1xf32>
    %48 = arith.addf %47, %46 : vector<128x1xf32>
    %cst_21 = arith.constant 1.000000e+00 : f32
    %49 = vector.broadcast %cst_21 : f32 to vector<128x1xf32>
    %50 = arith.divf %49, %48 : vector<128x1xf32>
    %c0_22 = arith.constant 0 : index
    %c0_23 = arith.constant 0 : index
    %51 = vector.load %arg5[%c0_22, %c0_23] : memref<128x1xf32, #tpu.memory_space<vmem>>, vector<128x1xf32>
    tpu.vector_store %arg5[%c0_22, %c0_23], %50 {strides = array<i32>} : memref<128x1xf32, #tpu.memory_space<vmem>>, vector<128x1xf32>,
    return
  }
  func.func @transform_0(%arg0: i32) -> (i32, i32) {
    %c0_i32 = arith.constant 0 : i32
    %c0_i32_0 = arith.constant 0 : i32
    return %arg0, %c0_i32 : i32, i32
  }
  func.func @transform_1(%arg0: i32) -> (i32, i32) {
    %c0_i32 = arith.constant 0 : i32
    %c0_i32_0 = arith.constant 0 : i32
    %c0_i32_1 = arith.constant 0 : i32
    return %c0_i32, %c0_i32_0 : i32, i32
  }
  func.func @transform_2(%arg0: i32) -> (i32, i32) {
    %c0_i32 = arith.constant 0 : i32
    %c0_i32_0 = arith.constant 0 : i32
    %c0_i32_1 = arith.constant 0 : i32
    return %c0_i32, %c0_i32_0 : i32, i32
  }
  func.func @transform_3(%arg0: i32) -> (i32, i32) {
    %c0_i32 = arith.constant 0 : i32
    %c0_i32_0 = arith.constant 0 : i32
    %c0_i32_1 = arith.constant 0 : i32
    return %c0_i32, %c0_i32_0 : i32, i32
  }
  func.func @transform_4(%arg0: i32) -> (i32, i32) {
    %c0_i32 = arith.constant 0 : i32
    %c0_i32_0 = arith.constant 0 : i32
    return %arg0, %c0_i32 : i32, i32
  }
}

</mosaic_0001>

<llo_original>
// kernel: tpu_custom_call.1
$region0: #{tpu_custom_call.1}
  #allocation0 [shape = 'u32[]', space=smem, size = 0x4, offset = 0x4, fixed_abs, tag = 'smem constant byte address 0x4 - core index']
  #allocation1 [shape = 'u32[144,128]{1,0:T(1,128)}', space=vmem, size = 0x12000, scoped, tag = 'internal scratch']
  %s0 = inlined_call_operand.vmem [shape: f32[256,99], index: 0, kind: input, shape index: {}]
  %s1 = inlined_call_operand.vmem [shape: bf16[99,256], index: 1, kind: input, shape index: {}]
  %s2 = inlined_call_operand.vmem [shape: bf16[128,128], index: 2, kind: input, shape index: {}]
  %s3 = inlined_call_operand.vmem [shape: f32[8,128], index: 3, kind: input, shape index: {}]
  %s4 = inlined_call_operand.vmem [shape: f32[256,1], index: 4, kind: output, shape index: {}]
  %s5 = sld [smem:[#allocation0]]
  $region49: #{tpu_custom_call.1} parent=0
    _
  %s7 = ssub.s32 1, %s5
  %s8 = scalar_select 0, %s7, %s5
  loop: start=0, step=1, limit=4
  $region2: #{tpu_custom_call.1} parent=0 // loop_pre_header
    _
  $region3: #{tpu_custom_call.1} parent=0 // loop_header
    %s10 = sphi 0, %s14
    %p11 = scmp.ge.s32.totalorder %s10, 4
    %s20 = sphi 0, %s22
    %s23 = sphi 0, %s20
    %s24 = sphi 0, %s23
    %s40 = sphi 0, %s24
    %s44 = sphi 0, %s44
    %s46 = sphi 0, %s44
    %s47 = sphi 0, %s46
    %s61 = sphi 0, %s47
    %s65 = sphi 0, %s65
    %s67 = sphi 0, %s65
    %s68 = sphi 0, %s67
    %s82 = sphi 0, %s68
    %s86 = sphi 0, %s86
    %s88 = sphi 0, %s86
    %s89 = sphi 0, %s88
    %s103 = sphi 0, %s89
    %s109 = sphi 0, %s111
    %s112 = sphi 0, %s109
    %s113 = sphi 0, %s112
    %s129 = sphi 0, %s113
  $region4: #{tpu_custom_call.1} parent=0 // loop_header_branch
    %13 = sbr.rel (%p11) target = $region8
  $region5: #{tpu_custom_call.1} parent=0 // loop_body
    %s15 = ssub.s32 %s10, 1
    %s16 = ssub.s32 %s10, 2
    %s17 = sadd.s32 %s10, 1
    %s18 = ssub.s32 %s10, %s17
    %p19 = scmp.eq.s32.totalorder %s18, 0
    %s21 = sadd.s32 %s20, 1
    %s22 = scalar_select %p19, %s20, %s21
    %p25 = pneg %p19
    %p26 = scmp.eq.s32.totalorder %s10, 1
    %p27 = por %p25, %p26
    %p28 = scmp.ne.s32.totalorder %s20, %s23
    %p29 = scmp.eq.s32.totalorder %s10, 0
    %p30 = por %p28, %p29
    %p31 = scmp.ne.s32.totalorder %s20, %s23
    %p32 = scmp.eq.s32.totalorder %s15, 1
    %p33 = por %p31, %p32
    %p34 = scmp.ne.s32.totalorder %s23, %s24
    %p35 = scmp.eq.s32.totalorder %s15, 0
    %p36 = por %p34, %p35
    %p37 = scmp.ne.s32.totalorder %s23, %s24
    %p38 = scmp.eq.s32.totalorder %s16, 1
    %p39 = por %p37, %p38
    %p41 = scmp.ne.s32.totalorder %s24, %s40
    %p42 = scmp.eq.s32.totalorder %s16, 0
    %p43 = por %p41, %p42
    %s45 = sadd.s32 %s44, 1
    %p48 = scmp.eq.s32.totalorder %s10, 1
    %p49 = scmp.ne.s32.totalorder %s44, %s46
    %p50 = scmp.eq.s32.totalorder %s10, 0
    %p51 = por %p49, %p50
    %p52 = scmp.ne.s32.totalorder %s44, %s46
    %p53 = scmp.eq.s32.totalorder %s15, 1
    %p54 = por %p52, %p53
    %p55 = scmp.ne.s32.totalorder %s46, %s47
    %p56 = scmp.eq.s32.totalorder %s15, 0
    %p57 = por %p55, %p56
    %p58 = scmp.ne.s32.totalorder %s46, %s47
    %p59 = scmp.eq.s32.totalorder %s16, 1
    %p60 = por %p58, %p59
    %p62 = scmp.ne.s32.totalorder %s47, %s61
    %p63 = scmp.eq.s32.totalorder %s16, 0
    %p64 = por %p62, %p63
    %s66 = sadd.s32 %s65, 1
    %p69 = scmp.eq.s32.totalorder %s10, 1
    %p70 = scmp.ne.s32.totalorder %s65, %s67
    %p71 = scmp.eq.s32.totalorder %s10, 0
    %p72 = por %p70, %p71
    %p73 = scmp.ne.s32.totalorder %s65, %s67
    %p74 = scmp.eq.s32.totalorder %s15, 1
    %p75 = por %p73, %p74
    %p76 = scmp.ne.s32.totalorder %s67, %s68
    %p77 = scmp.eq.s32.totalorder %s15, 0
    %p78 = por %p76, %p77
    %p79 = scmp.ne.s32.totalorder %s67, %s68
    %p80 = scmp.eq.s32.totalorder %s16, 1
    %p81 = por %p79, %p80
    %p83 = scmp.ne.s32.totalorder %s68, %s82
    %p84 = scmp.eq.s32.totalorder %s16, 0
    %p85 = por %p83, %p84
    %s87 = sadd.s32 %s86, 1
    %p90 = scmp.eq.s32.totalorder %s10, 1
    %p91 = scmp.ne.s32.totalorder %s86, %s88
    %p92 = scmp.eq.s32.totalorder %s10, 0
    %p93 = por %p91, %p92
    %p94 = scmp.ne.s32.totalorder %s86, %s88
    %p95 = scmp.eq.s32.totalorder %s15, 1
    %p96 = por %p94, %p95
    %p97 = scmp.ne.s32.totalorder %s88, %s89
    %p98 = scmp.eq.s32.totalorder %s15, 0
    %p99 = por %p97, %p98
    %p100 = scmp.ne.s32.totalorder %s88, %s89
    %p101 = scmp.eq.s32.totalorder %s16, 1
    %p102 = por %p100, %p101
    %p104 = scmp.ne.s32.totalorder %s89, %s103
    %p105 = scmp.eq.s32.totalorder %s16, 0
    %p106 = por %p104, %p105
    %s107 = ssub.s32 %s10, %s17
    %p108 = scmp.eq.s32.totalorder %s107, 0
    %s110 = sadd.s32 %s109, 1
    %s111 = scalar_select %p108, %s109, %s110
    %p114 = pneg %p108
    %p115 = scmp.eq.s32.totalorder %s10, 1
    %p116 = por %p114, %p115
    %p117 = scmp.ne.s32.totalorder %s109, %s112
    %p118 = scmp.eq.s32.totalorder %s10, 0
    %p119 = por %p117, %p118
    %p120 = scmp.ne.s32.totalorder %s109, %s112
    %p121 = scmp.eq.s32.totalorder %s15, 1
    %p122 = por %p120, %p121
    %p123 = scmp.ne.s32.totalorder %s112, %s113
    %p124 = scmp.eq.s32.totalorder %s15, 0
    %p125 = por %p123, %p124
    %p126 = scmp.ne.s32.totalorder %s112, %s113
    %p127 = scmp.eq.s32.totalorder %s16, 1
    %p128 = por %p126, %p127
    %p130 = scmp.ne.s32.totalorder %s113, %s129
    %p131 = scmp.eq.s32.totalorder %s16, 0
    %p132 = por %p130, %p131
    %p133 = scmp.le.s32.totalorder 1, %s10
    %p134 = scmp.lt.s32.totalorder %s10, 3
    %p135 = pnand %p133, %p134
    %p136 = pneg %p135
    // Predicated region
    $region9: #{tpu_custom_call.1} parent=5 // pred_check
      _
    $region10: #{tpu_custom_call.1} parent=5 // pred_check_branch
      %138 = sbr.rel (%p135) target = $region12
    $region11: #{tpu_custom_call.1} parent=5 // pred_region
      %s139 = ssub.s32 %s10, 1
      // Predicated region
      $region13: #{tpu_custom_call.1} parent=11 // pred_check
        %p140 = pneg %p57
      $region14: #{tpu_custom_call.1} parent=11 // pred_check_branch
        %142 = sbr.rel (%p140) target = $region16
      $region15: #{tpu_custom_call.1} parent=11 // pred_region
        _
      $region16: #{tpu_custom_call.1} parent=11 // pred_fallthru
        _
      // Predicated region
      $region17: #{tpu_custom_call.1} parent=11 // pred_check
        %p143 = pneg %p78
      $region18: #{tpu_custom_call.1} parent=11 // pred_check_branch
        %145 = sbr.rel (%p143) target = $region20
      $region19: #{tpu_custom_call.1} parent=11 // pred_region
        _
      $region20: #{tpu_custom_call.1} parent=11 // pred_fallthru
        _
      // Predicated region
      $region21: #{tpu_custom_call.1} parent=11 // pred_check
        %p146 = pneg %p99
      $region22: #{tpu_custom_call.1} parent=11 // pred_check_branch
        %148 = sbr.rel (%p146) target = $region24
      $region23: #{tpu_custom_call.1} parent=11 // pred_region
        _
      $region24: #{tpu_custom_call.1} parent=11 // pred_fallthru
        _
    $region12: #{tpu_custom_call.1} parent=5 // pred_fallthru
      _
    %p149 = scmp.lt.s32.totalorder %s10, 2
    // Predicated region
    $region25: #{tpu_custom_call.1} parent=5 // pred_check
      %p150 = pneg %p149
    $region26: #{tpu_custom_call.1} parent=5 // pred_check_branch
      %152 = sbr.rel (%p150) target = $region28
    $region27: #{tpu_custom_call.1} parent=5 // pred_region
      // Predicated region
      $region29: #{tpu_custom_call.1} parent=27 // pred_check
        %p153 = pneg %p30
      $region30: #{tpu_custom_call.1} parent=27 // pred_check_branch
        %155 = sbr.rel (%p153) target = $region32
      $region31: #{tpu_custom_call.1} parent=27 // pred_region
        %s156 = smul.u32 16, %s10
        %p157 = scmp.lt.s32.totalorder %s156, 31
        %s158 = scalar_select %p157, %s156, 31
        %s159 = smul.addr %s158, 8
        %s160 = scalar_lea.vmem %s0, %s159
        %s161 = smul.u32 16, %s10
      $region32: #{tpu_custom_call.1} parent=27 // pred_fallthru
        _
    $region28: #{tpu_custom_call.1} parent=5 // pred_fallthru
      _
    %p162 = scmp.le.s32.totalorder 1, %s10
    %p163 = scmp.lt.s32.totalorder %s10, 3
    %p164 = pnand %p162, %p163
    %p165 = pneg %p164
    // Predicated region
    $region33: #{tpu_custom_call.1} parent=5 // pred_check
      _
    $region34: #{tpu_custom_call.1} parent=5 // pred_check_branch
      %167 = sbr.rel (%p164) target = $region36
    $region35: #{tpu_custom_call.1} parent=5 // pred_region
      %s168 = ssub.s32 %s10, 1
      %s169 = smul.u32 16, %s15
      %p170 = scmp.lt.s32.totalorder %s169, 31
      %s171 = scalar_select %p170, %s169, 31
      %s172 = smul.addr %s171, 8
      %s173 = scalar_lea.vmem %s0, %s172
      %p174 = pneg %p36
      %p175 = pneg %p33
      %p176 = pneg %p57
      %p177 = pneg %p54
      %p178 = pneg %p78
      %p179 = pneg %p75
      %p180 = pneg %p99
      %p181 = pneg %p96
      %p182 = pneg %p125
      %p183 = pneg %p122
      %s184 = smul.u32 16, %s15
      %p185 = scmp.lt.s32.totalorder %s184, 31
      %s186 = scalar_select %p185, %s184, 31
      %s187 = smul.addr %s186, 8
      %s188 = scalar_lea.vmem %s4, %s187
      %s189 = smul.u32 16, %s15
      %p190 = scmp.lt.s32.totalorder %s189, 31
      %s191 = scalar_select %p190, %s189, 31
      %s192 = smul.addr %s191, 8
      %s193 = scalar_lea.vmem %s0, %s192
      %s194 = smul.u32 16, %s15
      %s195 = smul.u32 16, %s15
      %p196 = scmp.lt.s32.totalorder %s195, 31
      %s197 = scalar_select %p196, %s195, 31
      %s198 = smul.addr %s197, 8
      %s199 = scalar_lea.vmem %s4, %s198
      %s200 = smul.u32 16, %s15
      %v202 = vld [vmem:[%s193] sm:$0xff]
      %v203 = vld [vmem:[%s193 + $0x8] sm:$0xff]
      %v204 = vld [vmem:[%s193 + $0x10] sm:$0xff]
      %v205 = vld [vmem:[%s193 + $0x18] sm:$0xff]
      %v206 = vld [vmem:[%s193 + $0x20] sm:$0xff]
      %v207 = vld [vmem:[%s193 + $0x28] sm:$0xff]
      %v208 = vld [vmem:[%s193 + $0x30] sm:$0xff]
      %v209 = vld [vmem:[%s193 + $0x38] sm:$0xff]
      %v210 = vld [vmem:[%s193 + $0x40] sm:$0xff]
      %v211 = vld [vmem:[%s193 + $0x48] sm:$0xff]
      %v212 = vld [vmem:[%s193 + $0x50] sm:$0xff]
      %v213 = vld [vmem:[%s193 + $0x58] sm:$0xff]
      %v214 = vld [vmem:[%s193 + $0x60] sm:$0xff]
      %v215 = vld [vmem:[%s193 + $0x68] sm:$0xff]
      %v216 = vld [vmem:[%s193 + $0x70] sm:$0xff]
      %v217 = vld [vmem:[%s193 + $0x78] sm:$0xff]
      %v218 = vpack.c.bf16 %v203, %v202
      %v219 = vpack.c.bf16 %v205, %v204
      %v220 = vpack.c.bf16 %v207, %v206
      %v221 = vpack.c.bf16 %v209, %v208
      %v222 = vpack.c.bf16 %v211, %v210
      %v223 = vpack.c.bf16 %v213, %v212
      %v224 = vpack.c.bf16 %v215, %v214
      %v225 = vpack.c.bf16 %v217, %v216
      %v226 = vld [vmem:[%s3] sm:$0x1]
      %v227 = vld [vmem:[%s3 + $0x1] sm:$0x1]
      %v228 = vld [vmem:[%s3 + $0x2] sm:$0x1]
      %v229 = vld [vmem:[%s3 + $0x3] sm:$0x1]
      %v230 = vld [vmem:[%s3 + $0x4] sm:$0x1]
      %v231 = vld [vmem:[%s3 + $0x5] sm:$0x1]
      %v232 = vld [vmem:[%s1] sm:$0xff]
      %v233 = vld [vmem:[%s1 + $0x8] sm:$0xff]
      %v234 = vld [vmem:[%s1 + $0x10] sm:$0xff]
      %v235 = vld [vmem:[%s1 + $0x18] sm:$0xff]
      %v236 = vld [vmem:[%s1 + $0x20] sm:$0xff]
      %v237 = vld [vmem:[%s1 + $0x28] sm:$0xff]
      %v238 = vld [vmem:[%s1 + $0x30] sm:$0xff]
      %v239 = vld [vmem:[%s1 + $0x38] sm:$0xff]
      %v240 = vld [vmem:[%s1 + $0x40] sm:$0xff]
      %v241 = vld [vmem:[%s1 + $0x48] sm:$0xff]
      %v242 = vld [vmem:[%s1 + $0x50] sm:$0xff]
      %v243 = vld [vmem:[%s1 + $0x58] sm:$0xff]
      %v244 = vld [vmem:[%s1 + $0x60] sm:$0x33]
      %v258 = vunpack.c.l.b16 %v232
      %v259 = vunpack.c.h.b16 %v232
      %v260 = vunpack.c.l.b16 %v233
      %v261 = vunpack.c.h.b16 %v233
      %v262 = vunpack.c.l.b16 %v234
      %v263 = vunpack.c.h.b16 %v234
      %v264 = vunpack.c.l.b16 %v235
      %v265 = vunpack.c.h.b16 %v235
      %v266 = vunpack.c.l.b16 %v236
      %v267 = vunpack.c.h.b16 %v236
      %v268 = vunpack.c.l.b16 %v237
      %v269 = vunpack.c.h.b16 %v237
      %v270 = vunpack.c.l.b16 %v238
      %v271 = vunpack.c.h.b16 %v238
      %v272 = vunpack.c.l.b16 %v239
      %v273 = vunpack.c.h.b16 %v239
      %v274 = vunpack.c.l.b16 %v240
      %v275 = vunpack.c.h.b16 %v240
      %v276 = vunpack.c.l.b16 %v241
      %v277 = vunpack.c.h.b16 %v241
      %v278 = vunpack.c.l.b16 %v242
      %v279 = vunpack.c.h.b16 %v242
      %v280 = vunpack.c.l.b16 %v243
      %v281 = vunpack.c.h.b16 %v243
      %v282 = vunpack.c.l.b16 %v244
      %v283 = vunpack.c.h.b16 %v244
      %v284 = vpack.c.b16 %v260, %v258
      %v285 = vpack.c.b16 %v261, %v259
      %v286 = vpack.c.b16 %v264, %v262
      %v287 = vpack.c.b16 %v265, %v263
      %v288 = vpack.c.b16 %v268, %v266
      %v289 = vpack.c.b16 %v269, %v267
      %v290 = vpack.c.b16 %v272, %v270
      %v291 = vpack.c.b16 %v273, %v271
      %v292 = vpack.c.b16 %v276, %v274
      %v293 = vpack.c.b16 %v277, %v275
      %v294 = vpack.c.b16 %v280, %v278
      %v295 = vpack.c.b16 %v281, %v279
      %v296 = vpack.c.b16 %v282, %v282
      %v297 = vpack.c.b16 %v283, %v283
      %vm310 = vcmask 809984
      %v312 = vsel %vm310, %v218, 0
      %v315 = vsel %vm310, %v219, 0
      %v318 = vsel %vm310, %v220, 0
      %v321 = vsel %vm310, %v221, 0
      %v324 = vsel %vm310, %v222, 0
      %v327 = vsel %vm310, %v223, 0
      %v330 = vsel %vm310, %v224, 0
      %v333 = vsel %vm310, %v225, 0
      %vm335 = vcmask 1040384
      %vm336 = vcmask 1041408
      %v337 = vsel %vm335, 4294967295, 65535
      %v338 = vsel %vm336, %v337, 0
      %v340 = vand.u32 %v296, %v338
      %v343 = vand.u32 %v297, %v338
      %345 = vmatprep.subr.bf16.mxu0 %v285
      %346 = vmatpush1.bf16.msra.mxu0 %v284
      %347 = vmatprep.subr.bf16.mxu0 %v287
      %348 = vmatpush1.bf16.msra.mxu0 %v286
      %349 = vmatprep.subr.bf16.mxu0 %v289
      %350 = vmatpush1.bf16.msra.mxu0 %v288
      %351 = vmatprep.subr.bf16.mxu0 %v291
      %352 = vmatpush1.bf16.msra.mxu0 %v290
      %353 = vmatprep.subr.bf16.mxu0 %v293
      %354 = vmatpush1.bf16.msra.mxu0 %v292
      %355 = vmatprep.subr.bf16.mxu0 %v295
      %356 = vmatpush1.bf16.msra.mxu0 %v294
      %357 = vmatprep.subr.bf16.mxu0 %v343
      %358 = vmatpush1.bf16.msra.mxu0 %v340
      %359 = vmatprep.subr.bf16.mxu0 0
      %360 = vmatpush1.bf16.msra.mxu0 0
      %361 = vmatprep.subr.bf16.mxu0 0
      %362 = vmatpush1.bf16.msra.mxu0 0
      %363 = vmatprep.subr.bf16.mxu0 0
      %364 = vmatpush1.bf16.msra.mxu0 0
      %365 = vmatprep.subr.bf16.mxu0 0
      %366 = vmatpush1.bf16.msra.mxu0 0
      %367 = vmatprep.subr.bf16.mxu0 0
      %368 = vmatpush1.bf16.msra.mxu0 0
      %369 = vmatprep.subr.bf16.mxu0 0
      %370 = vmatpush1.bf16.msra.mxu0 0
      %371 = vmatprep.subr.bf16.mxu0 0
      %372 = vmatpush1.bf16.msra.mxu0 0
      %373 = vmatprep.subr.bf16.mxu0 0
      %374 = vmatpush1.bf16.msra.mxu0 0
      %375 = vmatprep.subr.bf16.mxu0 0
      %376 = vmatpush1.bf16.msra.mxu0 0
      %377 = vmatprep.mubr.bf16.mxu0 0
      %378 = vmatmul.mubr.bf16.gmra.mrb[0].mxu0 %v312
      %v379 = vpop.f32.mrb[0].mxu0
      %v380 = vadd.f32 0.0, %v379
      %v381 = vpop.f32.mrb[0].mxu0
      %v382 = vadd.f32 0.0, %v381
      %v383 = vpop.f32.mrb[0].mxu0
      %v384 = vadd.f32 0.0, %v383
      %v385 = vpop.f32.mrb[0].mxu0
      %v386 = vadd.f32 0.0, %v385
      %387 = vmatprep.mubr.bf16.mxu0 0
      %388 = vmatmul.mubr.bf16.gmra.mrb[0].mxu0 %v315
      %v389 = vpop.f32.mrb[0].mxu0
      %v390 = vadd.f32 0.0, %v389
      %v391 = vpop.f32.mrb[0].mxu0
      %v392 = vadd.f32 0.0, %v391
      %v393 = vpop.f32.mrb[0].mxu0
      %v394 = vadd.f32 0.0, %v393
      %v395 = vpop.f32.mrb[0].mxu0
      %v396 = vadd.f32 0.0, %v395
      %397 = vmatprep.mubr.bf16.mxu0 0
      %398 = vmatmul.mubr.bf16.gmra.mrb[0].mxu0 %v318
      %v399 = vpop.f32.mrb[0].mxu0
      %v400 = vadd.f32 0.0, %v399
      %v401 = vpop.f32.mrb[0].mxu0
      %v402 = vadd.f32 0.0, %v401
      %v403 = vpop.f32.mrb[0].mxu0
      %v404 = vadd.f32 0.0, %v403
      %v405 = vpop.f32.mrb[0].mxu0
      %v406 = vadd.f32 0.0, %v405
      %407 = vmatprep.mubr.bf16.mxu0 0
      %408 = vmatmul.mubr.bf16.gmra.mrb[0].mxu0 %v321
      %v409 = vpop.f32.mrb[0].mxu0
      %v410 = vadd.f32 0.0, %v409
      %v411 = vpop.f32.mrb[0].mxu0
      %v412 = vadd.f32 0.0, %v411
      %v413 = vpop.f32.mrb[0].mxu0
      %v414 = vadd.f32 0.0, %v413
      %v415 = vpop.f32.mrb[0].mxu0
      %v416 = vadd.f32 0.0, %v415
      %417 = vmatprep.mubr.bf16.mxu0 0
      %418 = vmatmul.mubr.bf16.gmra.mrb[0].mxu0 %v324
      %v419 = vpop.f32.mrb[0].mxu0
      %v420 = vadd.f32 0.0, %v419
      %v421 = vpop.f32.mrb[0].mxu0
      %v422 = vadd.f32 0.0, %v421
      %v423 = vpop.f32.mrb[0].mxu0
      %v424 = vadd.f32 0.0, %v423
      %v425 = vpop.f32.mrb[0].mxu0
      %v426 = vadd.f32 0.0, %v425
      %427 = vmatprep.mubr.bf16.mxu0 0
      %428 = vmatmul.mubr.bf16.gmra.mrb[0].mxu0 %v327
      %v429 = vpop.f32.mrb[0].mxu0
      %v430 = vadd.f32 0.0, %v429
      %v431 = vpop.f32.mrb[0].mxu0
      %v432 = vadd.f32 0.0, %v431
      %v433 = vpop.f32.mrb[0].mxu0
      %v434 = vadd.f32 0.0, %v433
      %v435 = vpop.f32.mrb[0].mxu0
      %v436 = vadd.f32 0.0, %v435
      %437 = vmatprep.mubr.bf16.mxu0 0
      %438 = vmatmul.mubr.bf16.gmra.mrb[0].mxu0 %v330
      %v439 = vpop.f32.mrb[0].mxu0
      %v440 = vadd.f32 0.0, %v439
      %v441 = vpop.f32.mrb[0].mxu0
      %v442 = vadd.f32 0.0, %v441
      %v443 = vpop.f32.mrb[0].mxu0
      %v444 = vadd.f32 0.0, %v443
      %v445 = vpop.f32.mrb[0].mxu0
      %v446 = vadd.f32 0.0, %v445
      %447 = vmatprep.mubr.bf16.mxu0 0
      %448 = vmatmul.mubr.bf16.gmra.mrb[0].mxu0 %v333
      %v449 = vpop.f32.mrb[0].mxu0
      %v450 = vadd.f32 0.0, %v449
      %v451 = vpop.f32.mrb[0].mxu0
      %v452 = vadd.f32 0.0, %v451
      %v453 = vpop.f32.mrb[0].mxu0
      %v454 = vadd.f32 0.0, %v453
      %v455 = vpop.f32.mrb[0].mxu0
      %v456 = vadd.f32 0.0, %v455
      %457 = vdwg.mxu0
      %v458 = vlaneseq
      %v459 = vshrl.u32 %v458, 7
      %v460 = vsub.s32 0, %v459
      %v461 = vrot.slane %v226, %v460
      %v462 = vadd.f32 %v380, %v461
      %v463 = vadd.f32 %v384, %v461
      %v464 = vadd.f32 %v390, %v461
      %v465 = vadd.f32 %v394, %v461
      %v466 = vadd.f32 %v400, %v461
      %v467 = vadd.f32 %v404, %v461
      %v468 = vadd.f32 %v410, %v461
      %v469 = vadd.f32 %v414, %v461
      %v470 = vadd.f32 %v420, %v461
      %v471 = vadd.f32 %v424, %v461
      %v472 = vadd.f32 %v430, %v461
      %v473 = vadd.f32 %v434, %v461
      %v474 = vadd.f32 %v440, %v461
      %v475 = vadd.f32 %v444, %v461
      %v476 = vadd.f32 %v450, %v461
      %v477 = vadd.f32 %v454, %v461
      %vm478 = vcmp.gt.f32.partialorder %v462, 0.0
      %vm479 = vcmp.gt.f32.partialorder %v463, 0.0
      %vm480 = vcmp.gt.f32.partialorder %v464, 0.0
      %vm481 = vcmp.gt.f32.partialorder %v465, 0.0
      %vm482 = vcmp.gt.f32.partialorder %v466, 0.0
      %vm483 = vcmp.gt.f32.partialorder %v467, 0.0
      %vm484 = vcmp.gt.f32.partialorder %v468, 0.0
      %vm485 = vcmp.gt.f32.partialorder %v469, 0.0
      %vm486 = vcmp.gt.f32.partialorder %v470, 0.0
      %vm487 = vcmp.gt.f32.partialorder %v471, 0.0
      %vm488 = vcmp.gt.f32.partialorder %v472, 0.0
      %vm489 = vcmp.gt.f32.partialorder %v473, 0.0
      %vm490 = vcmp.gt.f32.partialorder %v474, 0.0
      %vm491 = vcmp.gt.f32.partialorder %v475, 0.0
      %vm492 = vcmp.gt.f32.partialorder %v476, 0.0
      %vm493 = vcmp.gt.f32.partialorder %v477, 0.0
      %v494 = vmul.f32 %v462, 0.2
      %v495 = vmul.f32 %v463, 0.2
      %v496 = vmul.f32 %v464, 0.2
      %v497 = vmul.f32 %v465, 0.2
      %v498 = vmul.f32 %v466, 0.2
      %v499 = vmul.f32 %v467, 0.2
      %v500 = vmul.f32 %v468, 0.2
      %v501 = vmul.f32 %v469, 0.2
      %v502 = vmul.f32 %v470, 0.2
      %v503 = vmul.f32 %v471, 0.2
      %v504 = vmul.f32 %v472, 0.2
      %v505 = vmul.f32 %v473, 0.2
      %v506 = vmul.f32 %v474, 0.2
      %v507 = vmul.f32 %v475, 0.2
      %v508 = vmul.f32 %v476, 0.2
      %v509 = vmul.f32 %v477, 0.2
      %v510 = vsel %vm478, %v462, %v494
      %v511 = vsel %vm479, %v463, %v495
      %v512 = vsel %vm480, %v464, %v496
      %v513 = vsel %vm481, %v465, %v497
      %v514 = vsel %vm482, %v466, %v498
      %v515 = vsel %vm483, %v467, %v499
      %v516 = vsel %vm484, %v468, %v500
      %v517 = vsel %vm485, %v469, %v501
      %v518 = vsel %vm486, %v470, %v502
      %v519 = vsel %vm487, %v471, %v503
      %v520 = vsel %vm488, %v472, %v504
      %v521 = vsel %vm489, %v473, %v505
      %v522 = vsel %vm490, %v474, %v506
      %v523 = vsel %vm491, %v475, %v507
      %v524 = vsel %vm492, %v476, %v508
      %v525 = vsel %vm493, %v477, %v509
      %v526 = vpack.c.bf16 %v511, %v510
      %v527 = vpack.c.bf16 %v513, %v512
      %v528 = vpack.c.bf16 %v515, %v514
      %v529 = vpack.c.bf16 %v517, %v516
      %v530 = vpack.c.bf16 %v519, %v518
      %v531 = vpack.c.bf16 %v521, %v520
      %v532 = vpack.c.bf16 %v523, %v522
      %v533 = vpack.c.bf16 %v525, %v524
      %v534 = vld [vmem:[%s2] sm:$0xf]
      %v535 = vld [vmem:[%s2 + $0x4] sm:$0xf]
      %v536 = vld [vmem:[%s2 + $0x8] sm:$0xf]
      %v537 = vld [vmem:[%s2 + $0xc] sm:$0xf]
      %v538 = vld [vmem:[%s2 + $0x10] sm:$0xf]
      %v539 = vld [vmem:[%s2 + $0x14] sm:$0xf]
      %v540 = vld [vmem:[%s2 + $0x18] sm:$0xf]
      %v541 = vld [vmem:[%s2 + $0x1c] sm:$0xf]
      %v542 = vld [vmem:[%s2 + $0x20] sm:$0xf]
      %v543 = vld [vmem:[%s2 + $0x24] sm:$0xf]
      %v544 = vld [vmem:[%s2 + $0x28] sm:$0xf]
      %v545 = vld [vmem:[%s2 + $0x2c] sm:$0xf]
      %v546 = vld [vmem:[%s2 + $0x30] sm:$0xf]
      %v547 = vld [vmem:[%s2 + $0x34] sm:$0xf]
      %v548 = vld [vmem:[%s2 + $0x38] sm:$0xf]
      %v549 = vld [vmem:[%s2 + $0x3c] sm:$0xf]
      %v566 = vunpack.c.l.b16 %v534
      %v567 = vunpack.c.l.b16 %v535
      %v568 = vunpack.c.l.b16 %v536
      %v569 = vunpack.c.l.b16 %v537
      %v570 = vunpack.c.l.b16 %v538
      %v571 = vunpack.c.l.b16 %v539
      %v572 = vunpack.c.l.b16 %v540
      %v573 = vunpack.c.l.b16 %v541
      %v574 = vunpack.c.l.b16 %v542
      %v575 = vunpack.c.l.b16 %v543
      %v576 = vunpack.c.l.b16 %v544
      %v577 = vunpack.c.l.b16 %v545
      %v578 = vunpack.c.l.b16 %v546
      %v579 = vunpack.c.l.b16 %v547
      %v580 = vunpack.c.l.b16 %v548
      %v581 = vunpack.c.l.b16 %v549
      %v582 = vpack.c.b16 %v567, %v566
      %v583 = vpack.c.b16 %v569, %v568
      %v584 = vpack.c.b16 %v571, %v570
      %v585 = vpack.c.b16 %v573, %v572
      %v586 = vpack.c.b16 %v575, %v574
      %v587 = vpack.c.b16 %v577, %v576
      %v588 = vpack.c.b16 %v579, %v578
      %v589 = vpack.c.b16 %v581, %v580
      %598 = vmatprep.subr.bf16.mxu0 0
      %599 = vmatpush1.bf16.msra.mxu0 %v582
      %600 = vmatprep.subr.bf16.mxu0 0
      %601 = vmatpush1.bf16.msra.mxu0 %v583
      %602 = vmatprep.subr.bf16.mxu0 0
      %603 = vmatpush1.bf16.msra.mxu0 %v584
      %604 = vmatprep.subr.bf16.mxu0 0
      %605 = vmatpush1.bf16.msra.mxu0 %v585
      %606 = vmatprep.subr.bf16.mxu0 0
      %607 = vmatpush1.bf16.msra.mxu0 %v586
      %608 = vmatprep.subr.bf16.mxu0 0
      %609 = vmatpush1.bf16.msra.mxu0 %v587
      %610 = vmatprep.subr.bf16.mxu0 0
      %611 = vmatpush1.bf16.msra.mxu0 %v588
      %612 = vmatprep.subr.bf16.mxu0 0
      %613 = vmatpush1.bf16.msra.mxu0 %v589
      %614 = vmatprep.subr.bf16.mxu0 0
      %615 = vmatpush1.bf16.msra.mxu0 0
      %616 = vmatprep.subr.bf16.mxu0 0
      %617 = vmatpush1.bf16.msra.mxu0 0
      %618 = vmatprep.subr.bf16.mxu0 0
      %619 = vmatpush1.bf16.msra.mxu0 0
      %620 = vmatprep.subr.bf16.mxu0 0
      %621 = vmatpush1.bf16.msra.mxu0 0
      %622 = vmatprep.subr.bf16.mxu0 0
      %623 = vmatpush1.bf16.msra.mxu0 0
      %624 = vmatprep.subr.bf16.mxu0 0
      %625 = vmatpush1.bf16.msra.mxu0 0
      %626 = vmatprep.subr.bf16.mxu0 0
      %627 = vmatpush1.bf16.msra.mxu0 0
      %628 = vmatprep.subr.bf16.mxu0 0
      %629 = vmatpush1.bf16.msra.mxu0 0
      %630 = vmatprep.mubr.bf16.mxu0 0
      %631 = vmatmul.mubr.bf16.gmra.mrb[0].mxu0 %v526
      %v632 = vpop.f32.mrb[0].mxu0
      %v633 = vadd.f32 %v382, %v632
      %v634 = vpop.f32.mrb[0].mxu0
      %v635 = vpop.f32.mrb[0].mxu0
      %v636 = vadd.f32 %v386, %v635
      %v637 = vpop.f32.mrb[0].mxu0
      %638 = vmatprep.mubr.bf16.mxu0 0
      %639 = vmatmul.mubr.bf16.gmra.mrb[0].mxu0 %v527
      %v640 = vpop.f32.mrb[0].mxu0
      %v641 = vadd.f32 %v392, %v640
      %v642 = vpop.f32.mrb[0].mxu0
      %v643 = vpop.f32.mrb[0].mxu0
      %v644 = vadd.f32 %v396, %v643
      %v645 = vpop.f32.mrb[0].mxu0
      %646 = vmatprep.mubr.bf16.mxu0 0
      %647 = vmatmul.mubr.bf16.gmra.mrb[0].mxu0 %v528
      %v648 = vpop.f32.mrb[0].mxu0
      %v649 = vadd.f32 %v402, %v648
      %v650 = vpop.f32.mrb[0].mxu0
      %v651 = vpop.f32.mrb[0].mxu0
      %v652 = vadd.f32 %v406, %v651
      %v653 = vpop.f32.mrb[0].mxu0
      %654 = vmatprep.mubr.bf16.mxu0 0
      %655 = vmatmul.mubr.bf16.gmra.mrb[0].mxu0 %v529
      %v656 = vpop.f32.mrb[0].mxu0
      %v657 = vadd.f32 %v412, %v656
      %v658 = vpop.f32.mrb[0].mxu0
      %v659 = vpop.f32.mrb[0].mxu0
      %v660 = vadd.f32 %v416, %v659
      %v661 = vpop.f32.mrb[0].mxu0
      %662 = vmatprep.mubr.bf16.mxu0 0
      %663 = vmatmul.mubr.bf16.gmra.mrb[0].mxu0 %v530
      %v664 = vpop.f32.mrb[0].mxu0
      %v665 = vadd.f32 %v422, %v664
      %v666 = vpop.f32.mrb[0].mxu0
      %v667 = vpop.f32.mrb[0].mxu0
      %v668 = vadd.f32 %v426, %v667
      %v669 = vpop.f32.mrb[0].mxu0
      %670 = vmatprep.mubr.bf16.mxu0 0
      %671 = vmatmul.mubr.bf16.gmra.mrb[0].mxu0 %v531
      %v672 = vpop.f32.mrb[0].mxu0
      %v673 = vadd.f32 %v432, %v672
      %v674 = vpop.f32.mrb[0].mxu0
      %v675 = vpop.f32.mrb[0].mxu0
      %v676 = vadd.f32 %v436, %v675
      %v677 = vpop.f32.mrb[0].mxu0
      %678 = vmatprep.mubr.bf16.mxu0 0
      %679 = vmatmul.mubr.bf16.gmra.mrb[0].mxu0 %v532
      %v680 = vpop.f32.mrb[0].mxu0
      %v681 = vadd.f32 %v442, %v680
      %v682 = vpop.f32.mrb[0].mxu0
      %v683 = vpop.f32.mrb[0].mxu0
      %v684 = vadd.f32 %v446, %v683
      %v685 = vpop.f32.mrb[0].mxu0
      %686 = vmatprep.mubr.bf16.mxu0 0
      %687 = vmatmul.mubr.bf16.gmra.mrb[0].mxu0 %v533
      %v688 = vpop.f32.mrb[0].mxu0
      %v689 = vadd.f32 %v452, %v688
      %v690 = vpop.f32.mrb[0].mxu0
      %v691 = vpop.f32.mrb[0].mxu0
      %v692 = vadd.f32 %v456, %v691
      %v693 = vpop.f32.mrb[0].mxu0
      %694 = vdwg.mxu0
      %v695 = vlaneseq
      %v696 = vshrl.u32 %v695, 7
      %v697 = vsub.s32 0, %v696
      %v698 = vrot.slane %v227, %v697
      %v699 = vadd.f32 %v633, %v698
      %v700 = vadd.f32 %v636, %v698
      %v701 = vadd.f32 %v641, %v698
      %v702 = vadd.f32 %v644, %v698
      %v703 = vadd.f32 %v649, %v698
      %v704 = vadd.f32 %v652, %v698
      %v705 = vadd.f32 %v657, %v698
      %v706 = vadd.f32 %v660, %v698
      %v707 = vadd.f32 %v665, %v698
      %v708 = vadd.f32 %v668, %v698
      %v709 = vadd.f32 %v673, %v698
      %v710 = vadd.f32 %v676, %v698
      %v711 = vadd.f32 %v681, %v698
      %v712 = vadd.f32 %v684, %v698
      %v713 = vadd.f32 %v689, %v698
      %v714 = vadd.f32 %v692, %v698
      %vm715 = vcmp.gt.f32.partialorder %v699, 0.0
      %vm716 = vcmp.gt.f32.partialorder %v700, 0.0
      %vm717 = vcmp.gt.f32.partialorder %v701, 0.0
      %vm718 = vcmp.gt.f32.partialorder %v702, 0.0
      %vm719 = vcmp.gt.f32.partialorder %v703, 0.0
      %vm720 = vcmp.gt.f32.partialorder %v704, 0.0
      %vm721 = vcmp.gt.f32.partialorder %v705, 0.0
      %vm722 = vcmp.gt.f32.partialorder %v706, 0.0
      %vm723 = vcmp.gt.f32.partialorder %v707, 0.0
      %vm724 = vcmp.gt.f32.partialorder %v708, 0.0
      %vm725 = vcmp.gt.f32.partialorder %v709, 0.0
      %vm726 = vcmp.gt.f32.partialorder %v710, 0.0
      %vm727 = vcmp.gt.f32.partialorder %v711, 0.0
      %vm728 = vcmp.gt.f32.partialorder %v712, 0.0
      %vm729 = vcmp.gt.f32.partialorder %v713, 0.0
      %vm730 = vcmp.gt.f32.partialorder %v714, 0.0
      %v731 = vmul.f32 %v699, 0.2
      %v732 = vmul.f32 %v700, 0.2
      %v733 = vmul.f32 %v701, 0.2
      %v734 = vmul.f32 %v702, 0.2
      %v735 = vmul.f32 %v703, 0.2
      %v736 = vmul.f32 %v704, 0.2
      %v737 = vmul.f32 %v705, 0.2
      %v738 = vmul.f32 %v706, 0.2
      %v739 = vmul.f32 %v707, 0.2
      %v740 = vmul.f32 %v708, 0.2
      %v741 = vmul.f32 %v709, 0.2
      %v742 = vmul.f32 %v710, 0.2
      %v743 = vmul.f32 %v711, 0.2
      %v744 = vmul.f32 %v712, 0.2
      %v745 = vmul.f32 %v713, 0.2
      %v746 = vmul.f32 %v714, 0.2
      %v747 = vsel %vm715, %v699, %v731
      %v748 = vsel %vm716, %v700, %v732
      %v749 = vsel %vm717, %v701, %v733
      %v750 = vsel %vm718, %v702, %v734
      %v751 = vsel %vm719, %v703, %v735
      %v752 = vsel %vm720, %v704, %v736
      %v753 = vsel %vm721, %v705, %v737
      %v754 = vsel %vm722, %v706, %v738
      %v755 = vsel %vm723, %v707, %v739
      %v756 = vsel %vm724, %v708, %v740
      %v757 = vsel %vm725, %v709, %v741
      %v758 = vsel %vm726, %v710, %v742
      %v759 = vsel %vm727, %v711, %v743
      %v760 = vsel %vm728, %v712, %v744
      %v761 = vsel %vm729, %v713, %v745
      %v762 = vsel %vm730, %v714, %v746
      %v763 = vlaneseq
      %v764 = vshrl.u32 %v763, 7
      %v765 = vsub.s32 0, %v764
      %v766 = vrot.slane %v228, %v765
      %v767 = vmul.f32 %v747, %v766
      %v768 = vmul.f32 %v748, %v766
      %v769 = vmul.f32 %v749, %v766
      %v770 = vmul.f32 %v750, %v766
      %v771 = vmul.f32 %v751, %v766
      %v772 = vmul.f32 %v752, %v766
      %v773 = vmul.f32 %v753, %v766
      %v774 = vmul.f32 %v754, %v766
      %v775 = vmul.f32 %v755, %v766
      %v776 = vmul.f32 %v756, %v766
      %v777 = vmul.f32 %v757, %v766
      %v778 = vmul.f32 %v758, %v766
      %v779 = vmul.f32 %v759, %v766
      %v780 = vmul.f32 %v760, %v766
      %v781 = vmul.f32 %v761, %v766
      %v782 = vmul.f32 %v762, %v766
      %v783 = vlaneseq
      %v784 = vshrl.u32 %v783, 7
      %v785 = vsub.s32 0, %v784
      %v786 = vrot.slane %v229, %v785
      %v787 = vmul.f32 %v510, %v786
      %v788 = vmul.f32 %v511, %v786
      %v789 = vmul.f32 %v512, %v786
      %v790 = vmul.f32 %v513, %v786
      %v791 = vmul.f32 %v514, %v786
      %v792 = vmul.f32 %v515, %v786
      %v793 = vmul.f32 %v516, %v786
      %v794 = vmul.f32 %v517, %v786
      %v795 = vmul.f32 %v518, %v786
      %v796 = vmul.f32 %v519, %v786
      %v797 = vmul.f32 %v520, %v786
      %v798 = vmul.f32 %v521, %v786
      %v799 = vmul.f32 %v522, %v786
      %v800 = vmul.f32 %v523, %v786
      %v801 = vmul.f32 %v524, %v786
      %v802 = vmul.f32 %v525, %v786
      %v803 = vadd.f32 %v767, %v787
      %v804 = vadd.f32 %v768, %v788
      %v805 = vadd.f32 %v769, %v789
      %v806 = vadd.f32 %v770, %v790
      %v807 = vadd.f32 %v771, %v791
      %v808 = vadd.f32 %v772, %v792
      %v809 = vadd.f32 %v773, %v793
      %v810 = vadd.f32 %v774, %v794
      %v811 = vadd.f32 %v775, %v795
      %v812 = vadd.f32 %v776, %v796
      %v813 = vadd.f32 %v777, %v797
      %v814 = vadd.f32 %v778, %v798
      %v815 = vadd.f32 %v779, %v799
      %v816 = vadd.f32 %v780, %v800
      %v817 = vadd.f32 %v781, %v801
      %v818 = vadd.f32 %v782, %v802
      %819 = vadd.xlane.f32.xlu0 %v803
      %v820 = vpop.xlane.xlu0 %819
      %821 = vadd.xlane.f32.xlu0 %v804
      %v822 = vpop.xlane.xlu0 %821
      %823 = vadd.xlane.f32.xlu0 %v805
      %v824 = vpop.xlane.xlu0 %823
      %825 = vadd.xlane.f32.xlu0 %v806
      %v826 = vpop.xlane.xlu0 %825
      %827 = vadd.xlane.f32.xlu0 %v807
      %v828 = vpop.xlane.xlu0 %827
      %829 = vadd.xlane.f32.xlu0 %v808
      %v830 = vpop.xlane.xlu0 %829
      %831 = vadd.xlane.f32.xlu0 %v809
      %v832 = vpop.xlane.xlu0 %831
      %833 = vadd.xlane.f32.xlu0 %v810
      %v834 = vpop.xlane.xlu0 %833
      %835 = vadd.xlane.f32.xlu0 %v811
      %v836 = vpop.xlane.xlu0 %835
      %837 = vadd.xlane.f32.xlu0 %v812
      %v838 = vpop.xlane.xlu0 %837
      %839 = vadd.xlane.f32.xlu0 %v813
      %v840 = vpop.xlane.xlu0 %839
      %841 = vadd.xlane.f32.xlu0 %v814
      %v842 = vpop.xlane.xlu0 %841
      %843 = vadd.xlane.f32.xlu0 %v815
      %v844 = vpop.xlane.xlu0 %843
      %845 = vadd.xlane.f32.xlu0 %v816
      %v846 = vpop.xlane.xlu0 %845
      %847 = vadd.xlane.f32.xlu0 %v817
      %v848 = vpop.xlane.xlu0 %847
      %849 = vadd.xlane.f32.xlu0 %v818
      %v850 = vpop.xlane.xlu0 %849
      %v851 = vlaneseq
      %v852 = vshrl.u32 %v851, 7
      %v853 = vsub.s32 0, %v852
      %v854 = vrot.slane %v230, %v853
      %v855 = vmul.f32 %v202, %v854
      %v856 = vmul.f32 %v203, %v854
      %v857 = vmul.f32 %v204, %v854
      %v858 = vmul.f32 %v205, %v854
      %v859 = vmul.f32 %v206, %v854
      %v860 = vmul.f32 %v207, %v854
      %v861 = vmul.f32 %v208, %v854
      %v862 = vmul.f32 %v209, %v854
      %v863 = vmul.f32 %v210, %v854
      %v864 = vmul.f32 %v211, %v854
      %v865 = vmul.f32 %v212, %v854
      %v866 = vmul.f32 %v213, %v854
      %v867 = vmul.f32 %v214, %v854
      %v868 = vmul.f32 %v215, %v854
      %v869 = vmul.f32 %v216, %v854
      %v870 = vmul.f32 %v217, %v854
      %v871 = vsel %vm310, %v855, 0.0
      %872 = vadd.xlane.f32.xlu0 %v871
      %v873 = vpop.xlane.xlu0 %872
      %v874 = vsel %vm310, %v856, 0.0
      %875 = vadd.xlane.f32.xlu0 %v874
      %v876 = vpop.xlane.xlu0 %875
      %v877 = vsel %vm310, %v857, 0.0
      %878 = vadd.xlane.f32.xlu0 %v877
      %v879 = vpop.xlane.xlu0 %878
      %v880 = vsel %vm310, %v858, 0.0
      %881 = vadd.xlane.f32.xlu0 %v880
      %v882 = vpop.xlane.xlu0 %881
      %v883 = vsel %vm310, %v859, 0.0
      %884 = vadd.xlane.f32.xlu0 %v883
      %v885 = vpop.xlane.xlu0 %884
      %v886 = vsel %vm310, %v860, 0.0
      %887 = vadd.xlane.f32.xlu0 %v886
      %v888 = vpop.xlane.xlu0 %887
      %v889 = vsel %vm310, %v861, 0.0
      %890 = vadd.xlane.f32.xlu0 %v889
      %v891 = vpop.xlane.xlu0 %890
      %v892 = vsel %vm310, %v862, 0.0
      %893 = vadd.xlane.f32.xlu0 %v892
      %v894 = vpop.xlane.xlu0 %893
      %v895 = vsel %vm310, %v863, 0.0
      %896 = vadd.xlane.f32.xlu0 %v895
      %v897 = vpop.xlane.xlu0 %896
      %v898 = vsel %vm310, %v864, 0.0
      %899 = vadd.xlane.f32.xlu0 %v898
      %v900 = vpop.xlane.xlu0 %899
      %v901 = vsel %vm310, %v865, 0.0
      %902 = vadd.xlane.f32.xlu0 %v901
      %v903 = vpop.xlane.xlu0 %902
      %v904 = vsel %vm310, %v866, 0.0
      %905 = vadd.xlane.f32.xlu0 %v904
      %v906 = vpop.xlane.xlu0 %905
      %v907 = vsel %vm310, %v867, 0.0
      %908 = vadd.xlane.f32.xlu0 %v907
      %v909 = vpop.xlane.xlu0 %908
      %v910 = vsel %vm310, %v868, 0.0
      %911 = vadd.xlane.f32.xlu0 %v910
      %v912 = vpop.xlane.xlu0 %911
      %v913 = vsel %vm310, %v869, 0.0
      %914 = vadd.xlane.f32.xlu0 %v913
      %v915 = vpop.xlane.xlu0 %914
      %v916 = vsel %vm310, %v870, 0.0
      %917 = vadd.xlane.f32.xlu0 %v916
      %v918 = vpop.xlane.xlu0 %917
      %v919 = vadd.f32 %v820, %v873
      %v920 = vadd.f32 %v822, %v876
      %v921 = vadd.f32 %v824, %v879
      %v922 = vadd.f32 %v826, %v882
      %v923 = vadd.f32 %v828, %v885
      %v924 = vadd.f32 %v830, %v888
      %v925 = vadd.f32 %v832, %v891
      %v926 = vadd.f32 %v834, %v894
      %v927 = vadd.f32 %v836, %v897
      %v928 = vadd.f32 %v838, %v900
      %v929 = vadd.f32 %v840, %v903
      %v930 = vadd.f32 %v842, %v906
      %v931 = vadd.f32 %v844, %v909
      %v932 = vadd.f32 %v846, %v912
      %v933 = vadd.f32 %v848, %v915
      %v934 = vadd.f32 %v850, %v918
      %v935 = vlaneseq
      %v936 = vshrl.u32 %v935, 7
      %v937 = vsub.s32 0, %v936
      %v938 = vrot.slane %v231, %v937
      %v939 = vadd.f32 %v919, %v938
      %v940 = vadd.f32 %v920, %v938
      %v941 = vadd.f32 %v921, %v938
      %v942 = vadd.f32 %v922, %v938
      %v943 = vadd.f32 %v923, %v938
      %v944 = vadd.f32 %v924, %v938
      %v945 = vadd.f32 %v925, %v938
      %v946 = vadd.f32 %v926, %v938
      %v947 = vadd.f32 %v927, %v938
      %v948 = vadd.f32 %v928, %v938
      %v949 = vadd.f32 %v929, %v938
      %v950 = vadd.f32 %v930, %v938
      %v951 = vadd.f32 %v931, %v938
      %v952 = vadd.f32 %v932, %v938
      %v953 = vadd.f32 %v933, %v938
      %v954 = vadd.f32 %v934, %v938
      %v955 = vsub.f32 0.0, %v939
      %v956 = vsub.f32 0.0, %v940
      %v957 = vsub.f32 0.0, %v941
      %v958 = vsub.f32 0.0, %v942
      %v959 = vsub.f32 0.0, %v943
      %v960 = vsub.f32 0.0, %v944
      %v961 = vsub.f32 0.0, %v945
      %v962 = vsub.f32 0.0, %v946
      %v963 = vsub.f32 0.0, %v947
      %v964 = vsub.f32 0.0, %v948
      %v965 = vsub.f32 0.0, %v949
      %v966 = vsub.f32 0.0, %v950
      %v967 = vsub.f32 0.0, %v951
      %v968 = vsub.f32 0.0, %v952
      %v969 = vsub.f32 0.0, %v953
      %v970 = vsub.f32 0.0, %v954
      %v971 = vmul.f32 %v955, 1.442695
      %v972 = vpow.pop %v971
      %v973 = vmul.f32 %v956, 1.442695
      %v974 = vpow.pop %v973
      %v975 = vmul.f32 %v957, 1.442695
      %v976 = vpow.pop %v975
      %v977 = vmul.f32 %v958, 1.442695
      %v978 = vpow.pop %v977
      %v979 = vmul.f32 %v959, 1.442695
      %v980 = vpow.pop %v979
      %v981 = vmul.f32 %v960, 1.442695
      %v982 = vpow.pop %v981
      %v983 = vmul.f32 %v961, 1.442695
      %v984 = vpow.pop %v983
      %v985 = vmul.f32 %v962, 1.442695
      %v986 = vpow.pop %v985
      %v987 = vmul.f32 %v963, 1.442695
      %v988 = vpow.pop %v987
      %v989 = vmul.f32 %v964, 1.442695
      %v990 = vpow.pop %v989
      %v991 = vmul.f32 %v965, 1.442695
      %v992 = vpow.pop %v991
      %v993 = vmul.f32 %v966, 1.442695
      %v994 = vpow.pop %v993
      %v995 = vmul.f32 %v967, 1.442695
      %v996 = vpow.pop %v995
      %v997 = vmul.f32 %v968, 1.442695
      %v998 = vpow.pop %v997
      %v999 = vmul.f32 %v969, 1.442695
      %v1000 = vpow.pop %v999
      %v1001 = vmul.f32 %v970, 1.442695
      %v1002 = vpow.pop %v1001
      %v1003 = vadd.f32 %v972, 1.0
      %v1004 = vadd.f32 %v974, 1.0
      %v1005 = vadd.f32 %v976, 1.0
      %v1006 = vadd.f32 %v978, 1.0
      %v1007 = vadd.f32 %v980, 1.0
      %v1008 = vadd.f32 %v982, 1.0
      %v1009 = vadd.f32 %v984, 1.0
      %v1010 = vadd.f32 %v986, 1.0
      %v1011 = vadd.f32 %v988, 1.0
      %v1012 = vadd.f32 %v990, 1.0
      %v1013 = vadd.f32 %v992, 1.0
      %v1014 = vadd.f32 %v994, 1.0
      %v1015 = vadd.f32 %v996, 1.0
      %v1016 = vadd.f32 %v998, 1.0
      %v1017 = vadd.f32 %v1000, 1.0
      %v1018 = vadd.f32 %v1002, 1.0
      %v1019 = vrcp.pop %v1003
      %v1020 = vmul.f32 1.0, %v1019
      %v1021 = vrcp.pop %v1004
      %v1022 = vmul.f32 1.0, %v1021
      %v1023 = vrcp.pop %v1005
      %v1024 = vmul.f32 1.0, %v1023
      %v1025 = vrcp.pop %v1006
      %v1026 = vmul.f32 1.0, %v1025
      %v1027 = vrcp.pop %v1007
      %v1028 = vmul.f32 1.0, %v1027
      %v1029 = vrcp.pop %v1008
      %v1030 = vmul.f32 1.0, %v1029
      %v1031 = vrcp.pop %v1009
      %v1032 = vmul.f32 1.0, %v1031
      %v1033 = vrcp.pop %v1010
      %v1034 = vmul.f32 1.0, %v1033
      %v1035 = vrcp.pop %v1011
      %v1036 = vmul.f32 1.0, %v1035
      %v1037 = vrcp.pop %v1012
      %v1038 = vmul.f32 1.0, %v1037
      %v1039 = vrcp.pop %v1013
      %v1040 = vmul.f32 1.0, %v1039
      %v1041 = vrcp.pop %v1014
      %v1042 = vmul.f32 1.0, %v1041
      %v1043 = vrcp.pop %v1015
      %v1044 = vmul.f32 1.0, %v1043
      %v1045 = vrcp.pop %v1016
      %v1046 = vmul.f32 1.0, %v1045
      %v1047 = vrcp.pop %v1017
      %v1048 = vmul.f32 1.0, %v1047
      %v1049 = vrcp.pop %v1018
      %v1050 = vmul.f32 1.0, %v1049
      %vm1051 = vcmask 7168
      %1052 = vst.msk [vmem:[%s199] sm:$0xff] %vm1051, %v1020
      %1053 = vst.msk [vmem:[%s199 + $0x8] sm:$0xff] %vm1051, %v1022
      %1054 = vst.msk [vmem:[%s199 + $0x10] sm:$0xff] %vm1051, %v1024
      %1055 = vst.msk [vmem:[%s199 + $0x18] sm:$0xff] %vm1051, %v1026
      %1056 = vst.msk [vmem:[%s199 + $0x20] sm:$0xff] %vm1051, %v1028
      %1057 = vst.msk [vmem:[%s199 + $0x28] sm:$0xff] %vm1051, %v1030
      %1058 = vst.msk [vmem:[%s199 + $0x30] sm:$0xff] %vm1051, %v1032
      %1059 = vst.msk [vmem:[%s199 + $0x38] sm:$0xff] %vm1051, %v1034
      %1060 = vst.msk [vmem:[%s199 + $0x40] sm:$0xff] %vm1051, %v1036
      %1061 = vst.msk [vmem:[%s199 + $0x48] sm:$0xff] %vm1051, %v1038
      %1062 = vst.msk [vmem:[%s199 + $0x50] sm:$0xff] %vm1051, %v1040
      %1063 = vst.msk [vmem:[%s199 + $0x58] sm:$0xff] %vm1051, %v1042
      %1064 = vst.msk [vmem:[%s199 + $0x60] sm:$0xff] %vm1051, %v1044
      %1065 = vst.msk [vmem:[%s199 + $0x68] sm:$0xff] %vm1051, %v1046
      %1066 = vst.msk [vmem:[%s199 + $0x70] sm:$0xff] %vm1051, %v1048
      %1067 = vst.msk [vmem:[%s199 + $0x78] sm:$0xff] %vm1051, %v1050
      %s1068 = smul.u32 16, %s15
      %p1069 = scmp.lt.s32.totalorder %s1068, 31
      %s1070 = scalar_select %p1069, %s1068, 31
      %s1071 = smul.addr %s1070, 8
      %s1072 = scalar_lea.vmem %s4, %s1071
      // Predicated region
      $region37: #{tpu_custom_call.1} parent=35 // pred_check
        %p1073 = pneg %p122
      $region38: #{tpu_custom_call.1} parent=35 // pred_check_branch
        %1075 = sbr.rel (%p1073) target = $region40
      $region39: #{tpu_custom_call.1} parent=35 // pred_region
        %s1076 = smul.u32 16, %s15
      $region40: #{tpu_custom_call.1} parent=35 // pred_fallthru
        _
    $region36: #{tpu_custom_call.1} parent=5 // pred_fallthru
      _
    %p1077 = scmp.le.s32.totalorder 2, %s10
    // Predicated region
    $region41: #{tpu_custom_call.1} parent=5 // pred_check
      %p1078 = pneg %p1077
    $region42: #{tpu_custom_call.1} parent=5 // pred_check_branch
      %1080 = sbr.rel (%p1078) target = $region44
    $region43: #{tpu_custom_call.1} parent=5 // pred_region
      %s1081 = ssub.s32 %s10, 2
      // Predicated region
      $region45: #{tpu_custom_call.1} parent=43 // pred_check
        %p1082 = pneg %p128
      $region46: #{tpu_custom_call.1} parent=43 // pred_check_branch
        %1084 = sbr.rel (%p1082) target = $region48
      $region47: #{tpu_custom_call.1} parent=43 // pred_region
        %s1085 = smul.u32 16, %s16
        %p1086 = scmp.lt.s32.totalorder %s1085, 31
        %s1087 = scalar_select %p1086, %s1085, 31
        %s1088 = smul.addr %s1087, 8
        %s1089 = scalar_lea.vmem %s4, %s1088
      $region48: #{tpu_custom_call.1} parent=43 // pred_fallthru
        _
    $region44: #{tpu_custom_call.1} parent=5 // pred_fallthru
      _
  $region6: #{tpu_custom_call.1} parent=0 // loop_footer
    %s14 = sadd.s32 1, %s10
  $region7: #{tpu_custom_call.1} parent=0 // loop_footer_branch
    %9 = sbr.rel target = $region3
  $region8: #{tpu_custom_call.1} parent=0 // loop_exit
    _

</llo_original>
